<compile_context>
chip_gen: v7x
topology: tpu7x:2x2x1
jax: 0.10.0
libtpu: 0.0.40
codegen_flags: <defaults>
</compile_context>

<pallas_src>
import jax
import jax.numpy as jnp
from jax import lax
from jax.experimental import pallas as pl
from jax.experimental.pallas import tpu as pltpu


def _gsr_kernel(w_ref, ut_ref, xbd_ref, diag_ref, obd_ref, adj_ref, feat_ref):
    """Fused GSRLayer hot path, batch packed along lanes.

    w_ref    : (hr, hr)       learnable weights (shared across the batch)
    ut_ref   : (lr, B*lr)     [U_1^T | ... | U_B^T]
    xbd_ref  : (B*lr, B*hr)   blockdiag(X_1, ..., X_B)
    diag_ref : (hr, B*hr)     per-block identity mask (1.0 on block diagonals)
    obd_ref  : (B*hr, B*hr)   blockdiag(ones(hr, hr))
    adj_ref  : (hr, B*hr)     out: [norm_1 | ... | norm_B]        (lane-dense)
    feat_ref : (hr, B*hr)     out: [feat_1 | ... | feat_B]        (lane-dense)
    """
    w = w_ref[...]
    ut = ut_ref[...]
    x_bd = xbd_ref[...]
    diag_f = diag_ref[...]
    ones_bd = obd_ref[...]

    hr = w.shape[0]
    lr = ut.shape[0]
    nb = adj_ref.shape[1] // hr          # static batch size
    diag_b = diag_f > 0.5

    # connectivity_mx = W @ [I; I]  ==  W[:, :lr] + W[:, lr:]          (hr, lr)
    cm = w[:, :lr] + w[:, lr:]

    # b packed over the batch in the N (lane) dim: one lane-dense MXU matmul.
    b_pk = jnp.dot(cm, ut, preferred_element_type=jnp.float32)       # (hr, B*lr)

    # f_i = |b_i @ X_i| for every instance at once via blockdiag(X). (hr, B*hr)
    f_pk = jnp.abs(jnp.dot(b_pk, x_bd, preferred_element_type=jnp.float32))

    # f_d.fill_diagonal_(1)
    f_pk = jnp.where(diag_b, jnp.float32(1.0), f_pk)

    # Per-block row sums, broadcast across each block's columns, via one MXU
    # matmul against the block-diagonal ones mask.  rowsum >= 1 (diag forced
    # to 1, all entries >= 0), so rsqrt never produces inf.
    rs = jnp.dot(f_pk, ones_bd, preferred_element_type=jnp.float32)  # (hr, B*hr)
    r_row = lax.rsqrt(rs)                      # r_i[a], constant along block cols
    r_col = jnp.sum(r_row * diag_f, axis=0, keepdims=True)           # (1, B*hr): r_i[c]

    # normalize_adj_torch: norm_i = D_i f_i^T D_i.  Its transpose needs no
    # data movement:  norm_i^T[a, c] = f_i[a, c] * r_i[a] * r_i[c].
    normT_pk = f_pk * r_row * r_col                                   # (hr, B*hr)

    # blockdiag(norm_1^T, ..., norm_B^T): sublane tile + block mask.
    normT_bd = jnp.tile(normT_pk, (nb, 1)) * ones_bd                  # (B*hr, B*hr)

    # The single per-block transpose (norm = (norm^T)^T) as a mask-matmul
    # extraction from blockdiag(norm^T): 0/1 mask, so it is pure selection.
    norm_pk = jnp.einsum("ak,jk->aj", diag_f, normT_bd,
                         preferred_element_type=jnp.float32)          # (hr, B*hr)
    adj_ref[...] = norm_pk                                            # lane-dense store

    # features_i = norm_i @ norm_i^T, all instances in one lane-dense matmul.
    # The result is symmetric, so the reference's (x + x.T)/2 is a no-op.
    out_pk = jnp.dot(norm_pk, normT_bd, preferred_element_type=jnp.float32)
    # NOTE: the PyTorch reference hardcodes torch.eye(320); we use eye(hr_dim).
    out_pk = jnp.where(diag_b, jnp.float32(1.0), out_pk)
    feat_ref[...] = jnp.abs(out_pk)                                   # lane-dense store


def gsr_layer_batched(adj_mx, input_features, weights):
    """Batched GSRLayer.forward.

    adj_mx:         (B, lr_dim, lr_dim) float32, symmetric
    input_features: (B, lr_dim, hr_dim) float32
    weights:        (hr_dim, hr_dim) float32, hr_dim == 2 * lr_dim
    returns (normalized_adj_mx, features), both (B, hr_dim, hr_dim) float32
    """
    bsz, lr_dim, _ = adj_mx.shape
    hr_dim = weights.shape[0]
    assert hr_dim == 2 * lr_dim, "GSRLayer requires hr_dim == 2 * lr_dim"
    bl = bsz * lr_dim
    bh = bsz * hr_dim

    weights = weights.astype(jnp.float32)
    x = input_features.astype(jnp.float32)

    # Eigendecomposition (no Pallas equivalent) — torch.linalg.eigh(UPLO='U').
    # TODO(synk): eigh stays in the XLA wrapper; it dominates end-to-end latency.
    _, u_lr = jnp.linalg.eigh(adj_mx, UPLO="U", symmetrize_input=False)
    u_lr = u_lr.astype(jnp.float32)

    # ---- wrapper-side layout plumbing (XLA) so the kernel stays lane-dense ----
    # [U_1^T | ... | U_B^T]: folds the batch into the N dim of the first matmul.
    ut_cat = jnp.transpose(u_lr, (2, 0, 1)).reshape(lr_dim, bl)
    # blockdiag(X_1, ..., X_B): per-instance matmuls become ONE packed matmul.
    # O(B^2) bytes — fine at small B; tile the batch with a grid for large B.
    x_bd = jnp.einsum("pq,qlh->plqh", jnp.eye(bsz, dtype=jnp.float32),
                      x).reshape(bl, bh)
    # Constant masks (keep integer div/mod out of the kernel).
    diag_f = jnp.tile(jnp.eye(hr_dim, dtype=jnp.float32), (1, bsz))       # (hr, B*hr)
    ones_bd = jnp.kron(jnp.eye(bsz, dtype=jnp.float32),
                       jnp.ones((hr_dim, hr_dim), dtype=jnp.float32))     # (B*hr, B*hr)

    flops = 2 * hr_dim * lr_dim * bl          # cm @ ut_cat
    flops += 2 * hr_dim * bl * bh             # b  @ blockdiag(X)
    flops += 2 * hr_dim * bh * bh             # row-sum broadcast matmul
    flops += 2 * hr_dim * bh * bh             # norm extraction matmul
    flops += 2 * hr_dim * bh * bh             # norm @ blockdiag(norm^T)
    cost = pl.CostEstimate(
        flops=flops,
        transcendentals=hr_dim * bh,          # rsqrt
        bytes_accessed=4 * (weights.size + ut_cat.size + x_bd.size
                            + diag_f.size + ones_bd.size + 2 * hr_dim * bh))

    vmem = pl.BlockSpec(memory_space=pltpu.MemorySpace.VMEM)
    out_struct = jax.ShapeDtypeStruct((hr_dim, bh), jnp.float32)
    # Gridless: the whole packed problem (~1 MB) fits a single VMEM block on
    # v5e/v6e/v7x alike, so no pipeline prologue/epilogue or double buffering
    # is paid.  For large B, switch to grid=(cdiv(B, Bt),) with
    # dimension_semantics=("parallel",) and Bt sized for v7x's 64 MiB VMEM.
    adj_pk, feat_pk = pl.pallas_call(
        _gsr_kernel,
        out_shape=(out_struct, out_struct),
        in_specs=[vmem, vmem, vmem, vmem, vmem],
        out_specs=(vmem, vmem),
        cost_estimate=cost,
    )(weights, ut_cat, x_bd, diag_f, ones_bd)

    # Unpack the lane-dense (hr, B*hr) slabs back to (B, hr, hr).
    adj = jnp.transpose(adj_pk.reshape(hr_dim, bsz, hr_dim), (1, 0, 2))
    feat = jnp.transpose(feat_pk.reshape(hr_dim, bsz, hr_dim), (1, 0, 2))
    return adj, feat


def gsr_layer(adj_mx, input_features, weights):
    """Single-instance API matching the PyTorch module's forward signature.
    (A B=1 slab is only hr_dim lanes wide — batch calls for lane density.)"""
    adj, feat = gsr_layer_batched(adj_mx[None], input_features[None], weights)
    return adj[0], feat[0]


def weight_variable_glorot(key, output_dim):
    """Deterministic stand-in for the numpy glorot-uniform init in GSR-Net."""
    input_dim = output_dim
    init_range = jnp.sqrt(6.0 / (input_dim + output_dim))
    return jax.random.uniform(
        key, (input_dim, output_dim), dtype=jnp.float32,
        minval=-init_range, maxval=init_range)


def _gsr_ref(u_lr, x, w):
    """Pure-JAX reference mirroring the PyTorch forward (single instance,
    given precomputed eigenvectors)."""
    lr = u_lr.shape[0]
    hr = w.shape[0]
    ident = jnp.eye(lr, dtype=jnp.float32)
    s_d = jnp.concatenate([ident, ident], axis=0)
    cm = w @ s_d
    b = cm @ u_lr.T
    f_d = jnp.abs(b @ x)
    eye = jnp.eye(hr, dtype=bool)
    f_d = jnp.where(eye, jnp.float32(1.0), f_d)
    rowsum = f_d.sum(1)
    rinv = rowsum ** -0.5
    rinv = jnp.where(jnp.isinf(rinv), 0.0, rinv)
    d = jnp.diag(rinv)
    mx = jnp.matmul(jnp.matmul(f_d, d).T, d)
    out = mx @ mx.T
    out = (out + out.T) * 0.5
    out = jnp.where(eye, jnp.float32(1.0), out)
    return mx, jnp.abs(out)


if __name__ == "__main__":
    lr_dim = 16
    hr_dim = 2 * lr_dim            # 32
    batch = 8                      # batch * hr_dim = 256 -> lane-dense slabs

    key = jax.random.PRNGKey(0)
    k_w, k_adj, k_x = jax.random.split(key, 3)

    weights = weight_variable_glorot(k_w, hr_dim)                      # (32, 32)
    a = jax.random.normal(k_adj, (batch, lr_dim, lr_dim), dtype=jnp.float32)
    adj_mx = (a + jnp.swapaxes(a, -1, -2)) * 0.5                       # symmetric
    input_features = jax.random.normal(
        k_x, (batch, lr_dim, hr_dim), dtype=jnp.float32)               # (8, 16, 32)

    # Batched Pallas run.
    normalized_adj, feats = gsr_layer_batched(adj_mx, input_features, weights)
    jax.block_until_ready((normalized_adj, feats))

    assert normalized_adj.shape == (batch, hr_dim, hr_dim)
    assert feats.shape == (batch, hr_dim, hr_dim)
    assert bool(jnp.all(jnp.isfinite(normalized_adj)))
    assert bool(jnp.all(feats >= 0.0))
    for i in range(batch):
        assert bool(jnp.allclose(jnp.diagonal(feats[i]), 1.0))

    # Cross-check against a pure-JAX reference (same eigenvectors as wrapper).
    _, u_batch = jnp.linalg.eigh(adj_mx, UPLO="U", symmetrize_input=False)
    u_batch = u_batch.astype(jnp.float32)
    for i in range(batch):
        ref_adj, ref_feat = _gsr_ref(u_batch[i], input_features[i], weights)
        assert bool(jnp.allclose(normalized_adj[i], ref_adj,
                                 rtol=2e-3, atol=2e-3)), i
        assert bool(jnp.allclose(feats[i], ref_feat,
                                 rtol=2e-3, atol=2e-3)), i

    # Single-instance API (matches the PyTorch module signature).
    adj1, feat1 = gsr_layer(adj_mx[0], input_features[0], weights)
    jax.block_until_ready((adj1, feat1))
    assert adj1.shape == (hr_dim, hr_dim) and feat1.shape == (hr_dim, hr_dim)
    assert bool(jnp.allclose(jnp.diagonal(feat1), 1.0))
    assert bool(jnp.allclose(adj1, normalized_adj[0], rtol=2e-3, atol=2e-3))

    print("KERNEL_OK")
</pallas_src>

<mosaic_0001>
module attributes {stable_mosaic.version = 11 : i64} {
  func.func @_gsr_kernel(%arg0: memref<32x32xf32, #tpu.memory_space<vmem>>, %arg1: memref<16x128xf32, #tpu.memory_space<vmem>>, %arg2: memref<128x256xf32, #tpu.memory_space<vmem>>, %arg3: memref<32x256xf32, #tpu.memory_space<vmem>>, %arg4: memref<256x256xf32, #tpu.memory_space<vmem>>, %arg5: memref<32x256xf32, #tpu.memory_space<vmem>>, %arg6: memref<32x256xf32, #tpu.memory_space<vmem>>) attributes {dimension_semantics = [], scalar_prefetch = 0 : i64, scratch_operands = 0 : i64, tpu.core_type = #tpu.core_type<tc>} {
    %c0 = arith.constant 0 : index
    %c0_0 = arith.constant 0 : index
    %0 = vector.load %arg0[%c0, %c0_0] : memref<32x32xf32, #tpu.memory_space<vmem>>, vector<32x32xf32>
    %c0_1 = arith.constant 0 : index
    %c0_2 = arith.constant 0 : index
    %1 = vector.load %arg1[%c0_1, %c0_2] : memref<16x128xf32, #tpu.memory_space<vmem>>, vector<16x128xf32>
    %c0_3 = arith.constant 0 : index
    %c0_4 = arith.constant 0 : index
    %2 = vector.load %arg2[%c0_3, %c0_4] : memref<128x256xf32, #tpu.memory_space<vmem>>, vector<128x256xf32>
    %c0_5 = arith.constant 0 : index
    %c0_6 = arith.constant 0 : index
    %3 = vector.load %arg3[%c0_5, %c0_6] : memref<32x256xf32, #tpu.memory_space<vmem>>, vector<32x256xf32>
    %c0_7 = arith.constant 0 : index
    %c0_8 = arith.constant 0 : index
    %4 = vector.load %arg4[%c0_7, %c0_8] : memref<256x256xf32, #tpu.memory_space<vmem>>, vector<256x256xf32>
    %cst = arith.constant 5.000000e-01 : f32
    %5 = vector.broadcast %cst : f32 to vector<32x256xf32>
    %6 = arith.cmpf ogt, %3, %5 : vector<32x256xf32>
    %7 = vector.extract_strided_slice %0 {offsets = [0, 0], sizes = [32, 16], strides = [1, 1]} : vector<32x32xf32> to vector<32x16xf32>
    %8 = vector.extract_strided_slice %0 {offsets = [0, 16], sizes = [32, 16], strides = [1, 1]} : vector<32x32xf32> to vector<32x16xf32>
    %9 = arith.addf %7, %8 : vector<32x16xf32>
    %cst_9 = arith.constant dense<0.000000e+00> : vector<32x128xf32>
    %10 = tpu.matmul %9, %1, %cst_9 {dimension_numbers = #tpu.dot_dimension_numbers<[1], [0], [0], [1], [0, 0, 1, 1], [], []>} : vector<32x16xf32>, vector<16x128xf32>, vector<32x128xf32> -> vector<32x128xf32>
    %cst_10 = arith.constant dense<0.000000e+00> : vector<32x256xf32>
    %11 = tpu.matmul %10, %2, %cst_10 {dimension_numbers = #tpu.dot_dimension_numbers<[1], [0], [0], [1], [0, 0, 1, 1], [], []>} : vector<32x128xf32>, vector<128x256xf32>, vector<32x256xf32> -> vector<32x256xf32>
    %12 = math.absf %11 : vector<32x256xf32>
    %cst_11 = arith.constant 1.000000e+00 : f32
    %13 = vector.broadcast %cst_11 : f32 to vector<32x256xf32>
    %14 = arith.select %6, %13, %12 : vector<32x256xi1>, vector<32x256xf32>
    %cst_12 = arith.constant dense<0.000000e+00> : vector<32x256xf32>
    %15 = tpu.matmul %14, %4, %cst_12 {dimension_numbers = #tpu.dot_dimension_numbers<[1], [0], [0], [1], [0, 0, 1, 1], [], []>} : vector<32x256xf32>, vector<256x256xf32>, vector<32x256xf32> -> vector<32x256xf32>
    %16 = math.rsqrt %15 : vector<32x256xf32>
    %17 = arith.mulf %16, %3 : vector<32x256xf32>
    %cst_13 = arith.constant dense<0.000000e+00> : vector<256xf32>
    %18 = vector.multi_reduction <add>, %17, %cst_13 [0] : vector<32x256xf32> to vector<256xf32>
    %19 = vector.shape_cast %18 : vector<256xf32> to vector<1x256xf32>
    %20 = arith.mulf %14, %16 : vector<32x256xf32>
    %21 = vector.broadcast %19 : vector<1x256xf32> to vector<32x256xf32>
    %22 = arith.mulf %20, %21 : vector<32x256xf32>
    %23 = tpu.concatenate %22, %22, %22, %22, %22, %22, %22, %22 in 0 : vector<32x256xf32>, vector<32x256xf32>, vector<32x256xf32>, vector<32x256xf32>, vector<32x256xf32>, vector<32x256xf32>, vector<32x256xf32>, vector<32x256xf32> -> vector<256x256xf32>
    %24 = arith.mulf %23, %4 : vector<256x256xf32>
    "tpu.trace_start"() <{level = 10 : i32, message = "ak,jk->aj"}> : () -> ()
    %cst_14 = arith.constant dense<0.000000e+00> : vector<32x256xf32>
    %25 = tpu.matmul %3, %24, %cst_14 {dimension_numbers = #tpu.dot_dimension_numbers<[1], [1], [0], [0], [0, 0, 1, 0], [], []>} : vector<32x256xf32>, vector<256x256xf32>, vector<32x256xf32> -> vector<32x256xf32>
    "tpu.trace_stop"() : () -> ()
    %c0_15 = arith.constant 0 : index
    %c0_16 = arith.constant 0 : index
    %26 = vector.load %arg5[%c0_15, %c0_16] : memref<32x256xf32, #tpu.memory_space<vmem>>, vector<32x256xf32>
    tpu.vector_store %arg5[%c0_15, %c0_16], %25 {strides = array<i32>} : memref<32x256xf32, #tpu.memory_space<vmem>>, vector<32x256xf32>,
    %cst_17 = arith.constant dense<0.000000e+00> : vector<32x256xf32>
    %27 = tpu.matmul %25, %24, %cst_17 {dimension_numbers = #tpu.dot_dimension_numbers<[1], [0], [0], [1], [0, 0, 1, 1], [], []>} : vector<32x256xf32>, vector<256x256xf32>, vector<32x256xf32> -> vector<32x256xf32>
    %cst_18 = arith.constant 1.000000e+00 : f32
    %28 = vector.broadcast %cst_18 : f32 to vector<32x256xf32>
    %29 = arith.select %6, %28, %27 : vector<32x256xi1>, vector<32x256xf32>
    %30 = math.absf %29 : vector<32x256xf32>
    %c0_19 = arith.constant 0 : index
    %c0_20 = arith.constant 0 : index
    %31 = vector.load %arg6[%c0_19, %c0_20] : memref<32x256xf32, #tpu.memory_space<vmem>>, vector<32x256xf32>
    tpu.vector_store %arg6[%c0_19, %c0_20], %30 {strides = array<i32>} : memref<32x256xf32, #tpu.memory_space<vmem>>, vector<32x256xf32>,
    return
  }
}

</mosaic_0001>

<llo_original>
// kernel: tpu_custom_call.1
$region0: #{tpu_custom_call.1}
  #allocation0 [shape = 'u32[]', space=smem, size = 0x4, offset = 0x4, fixed_abs, tag = 'smem constant byte address 0x4 - core index']
  #allocation1 [shape = 'u32[144,128]{1,0:T(1,128)}', space=vmem, size = 0x12000, scoped, tag = 'internal scratch']
  %s0 = inlined_call_operand.hbm [shape: f32[32,32], index: 0, kind: input, shape index: {}]
  %s1 = inlined_call_operand.hbm [shape: f32[16,128], index: 1, kind: input, shape index: {}]
  %s2 = inlined_call_operand.hbm [shape: f32[128,256], index: 2, kind: input, shape index: {}]
  %s3 = inlined_call_operand.hbm [shape: f32[32,256], index: 3, kind: input, shape index: {}]
  %s4 = inlined_call_operand.hbm [shape: f32[256,256], index: 4, kind: input, shape index: {}]
  %s5 = inlined_call_operand.hbm [shape: f32[32,256], index: 5, kind: output, shape index: {0}]
  %s6 = inlined_call_operand.hbm [shape: f32[32,256], index: 6, kind: output, shape index: {1}]
  %7 = xla_tuple %s5, %s6
  %s8 = sld [smem:[#allocation0]]
  $region58: #{tpu_custom_call.1} parent=0
    _
  %s10 = ssub.s32 1, %s8
  %s11 = scalar_select 0, %s10, %s8
  $region1: #{tpu_custom_call.1} parent=0
    #allocation2 [shape = 'u8[16384]{0}', space=vmem, size = 0x4000, scoped, tag = 'input window, operand 0, single buffered']
    #allocation3 [shape = 's32[1]{0}', space=sflag, size = 0x4, scoped, tag = 'scoped memory for tpu_custom_call.1']
    #allocation4 [shape = 's32[1]{0}', space=sflag, size = 0x4, scoped, tag = 'scoped memory for tpu_custom_call.1']
    #allocation5 [shape = 'u8[8192]{0}', space=vmem, size = 0x2000, scoped, tag = 'input window, operand 1, single buffered']
    #allocation6 [shape = 's32[1]{0}', space=sflag, size = 0x4, scoped, tag = 'scoped memory for tpu_custom_call.1']
    #allocation7 [shape = 'u8[131072]{0}', space=vmem, size = 0x20000, scoped, tag = 'input window, operand 2, single buffered']
    #allocation8 [shape = 'u8[32768]{0}', space=vmem, size = 0x8000, scoped, tag = 'input window, operand 3, single buffered']
    #allocation9 [shape = 's32[1]{0}', space=sflag, size = 0x4, scoped, tag = 'scoped memory for tpu_custom_call.1']
    #allocation10 [shape = 'u8[262144]{0}', space=vmem, size = 0x40000, scoped, tag = 'input window, operand 4, single buffered']
    #allocation11 [shape = 'u8[32768]{0}', space=vmem, size = 0x8000, scoped, tag = 'output window, operand 0, single buffered']
    #allocation12 [shape = 'u8[32768]{0}', space=vmem, size = 0x8000, scoped, tag = 'output window, operand 1, single buffered']
    #allocation13 [shape = 's32[1]{0}', space=sflag, size = 0x4, scoped, tag = 'scoped memory for tpu_custom_call.1']
    %12 = vsyncpa [#allocation3], 0
    %13 = vsyncpa [#allocation6], 0
    %14 = vsyncpa [#allocation9], 0
    %15 = vsyncpa [#allocation4], 0
    %16 = vsyncpa [#allocation13], 0
    // Predicated region
    $region2: #{tpu_custom_call.1} parent=1 // pred_check
      _
    $region3: #{tpu_custom_call.1} parent=1 // pred_check_branch
      %18 = sbr.rel (0) target = $region5
    $region4: #{tpu_custom_call.1} parent=1 // pred_region
      %s20 = ssub.s32 512, 512
      %21 = vsyncadd [#allocation3], %s20
      %s22 = sshll.u32 [#allocation2], 4
      %s23 = int_to_ptr.vmem [resolvable:$true] %s22
      %28 = dma.hbm_to_vmem [thread:$0]  %s0, 512, %s23, [#allocation3], 128, 128, 8
    $region5: #{tpu_custom_call.1} parent=1 // pred_fallthru
      _
    // Predicated region
    $region6: #{tpu_custom_call.1} parent=1 // pred_check
      _
    $region7: #{tpu_custom_call.1} parent=1 // pred_check_branch
      %30 = sbr.rel (0) target = $region9
    $region8: #{tpu_custom_call.1} parent=1 // pred_region
      %s32 = ssub.s32 256, 256
      %33 = vsyncadd [#allocation6], %s32
      %s34 = sshll.u32 [#allocation5], 4
      %s35 = int_to_ptr.vmem [resolvable:$true] %s34
      %40 = dma.hbm_to_vmem [thread:$0]  %s1, 256, %s35, [#allocation6], 128, 128, 8
    $region9: #{tpu_custom_call.1} parent=1 // pred_fallthru
      _
    // Predicated region
    $region10: #{tpu_custom_call.1} parent=1 // pred_check
      _
    $region11: #{tpu_custom_call.1} parent=1 // pred_check_branch
      %42 = sbr.rel (0) target = $region13
    $region12: #{tpu_custom_call.1} parent=1 // pred_region
      %s44 = ssub.s32 4096, 4096
      %45 = vsyncadd [#allocation6], %s44
      %s46 = sshll.u32 [#allocation7], 4
      %s47 = int_to_ptr.vmem [resolvable:$true] %s46
      %52 = dma.hbm_to_vmem [thread:$0]  %s2, 4096, %s47, [#allocation6], 256, 256, 16
    $region13: #{tpu_custom_call.1} parent=1 // pred_fallthru
      _
    // Predicated region
    $region14: #{tpu_custom_call.1} parent=1 // pred_check
      _
    $region15: #{tpu_custom_call.1} parent=1 // pred_check_branch
      %54 = sbr.rel (0) target = $region17
    $region16: #{tpu_custom_call.1} parent=1 // pred_region
      %s56 = ssub.s32 1024, 1024
      %57 = vsyncadd [#allocation9], %s56
      %s58 = sshll.u32 [#allocation8], 4
      %s59 = int_to_ptr.vmem [resolvable:$true] %s58
      %64 = dma.hbm_to_vmem [thread:$0]  %s3, 1024, %s59, [#allocation9], 256, 256, 16
    $region17: #{tpu_custom_call.1} parent=1 // pred_fallthru
      _
    // Predicated region
    $region18: #{tpu_custom_call.1} parent=1 // pred_check
      _
    $region19: #{tpu_custom_call.1} parent=1 // pred_check_branch
      %66 = sbr.rel (0) target = $region21
    $region20: #{tpu_custom_call.1} parent=1 // pred_region
      %s68 = ssub.s32 8192, 8192
      %69 = vsyncadd [#allocation9], %s68
      %s70 = sshll.u32 [#allocation10], 4
      %s71 = int_to_ptr.vmem [resolvable:$true] %s70
      %76 = dma.hbm_to_vmem [thread:$0]  %s4, 8192, %s71, [#allocation9], 256, 256, 16
    $region21: #{tpu_custom_call.1} parent=1 // pred_fallthru
      _
    // Predicated region
    $region22: #{tpu_custom_call.1} parent=1 // pred_check
      _
    $region23: #{tpu_custom_call.1} parent=1 // pred_check_branch
      %78 = sbr.rel (0) target = $region25
    $region24: #{tpu_custom_call.1} parent=1 // pred_region
      %79 = dma.done [#allocation3], 512
    $region25: #{tpu_custom_call.1} parent=1 // pred_fallthru
      _
    // Predicated region
    $region26: #{tpu_custom_call.1} parent=1 // pred_check
      _
    $region27: #{tpu_custom_call.1} parent=1 // pred_check_branch
      %81 = sbr.rel (0) target = $region29
    $region28: #{tpu_custom_call.1} parent=1 // pred_region
      %82 = dma.done [#allocation6], 256
    $region29: #{tpu_custom_call.1} parent=1 // pred_fallthru
      _
    // Predicated region
    $region30: #{tpu_custom_call.1} parent=1 // pred_check
      _
    $region31: #{tpu_custom_call.1} parent=1 // pred_check_branch
      %84 = sbr.rel (0) target = $region33
    $region32: #{tpu_custom_call.1} parent=1 // pred_region
      %85 = dma.done [#allocation6], 4096
    $region33: #{tpu_custom_call.1} parent=1 // pred_fallthru
      _
    // Predicated region
    $region34: #{tpu_custom_call.1} parent=1 // pred_check
      _
    $region35: #{tpu_custom_call.1} parent=1 // pred_check_branch
      %87 = sbr.rel (0) target = $region37
    $region36: #{tpu_custom_call.1} parent=1 // pred_region
      %88 = dma.done [#allocation9], 1024
    $region37: #{tpu_custom_call.1} parent=1 // pred_fallthru
      _
    // Predicated region
    $region38: #{tpu_custom_call.1} parent=1 // pred_check
      _
    $region39: #{tpu_custom_call.1} parent=1 // pred_check_branch
      %90 = sbr.rel (0) target = $region41
    $region40: #{tpu_custom_call.1} parent=1 // pred_region
      %91 = dma.done [#allocation9], 8192
    $region41: #{tpu_custom_call.1} parent=1 // pred_fallthru
      _
    %v92 = vld [vmem:[#allocation2] sm:$0xff]
    %v93 = vld [vmem:[#allocation2 + $0x8] sm:$0xff]
    %v94 = vld [vmem:[#allocation2 + $0x10] sm:$0xff]
    %v95 = vld [vmem:[#allocation2 + $0x18] sm:$0xff]
    %v96 = vld [vmem:[#allocation5] sm:$0xff]
    %v97 = vld [vmem:[#allocation5 + $0x8] sm:$0xff]
    %v98 = vld [vmem:[#allocation7] sm:$0xff]
    %v99 = vld [vmem:[#allocation7 + $0x8] sm:$0xff]
    %v100 = vld [vmem:[#allocation7 + $0x10] sm:$0xff]
    %v101 = vld [vmem:[#allocation7 + $0x18] sm:$0xff]
    %v102 = vld [vmem:[#allocation7 + $0x20] sm:$0xff]
    %v103 = vld [vmem:[#allocation7 + $0x28] sm:$0xff]
    %v104 = vld [vmem:[#allocation7 + $0x30] sm:$0xff]
    %v105 = vld [vmem:[#allocation7 + $0x38] sm:$0xff]
    %v106 = vld [vmem:[#allocation7 + $0x40] sm:$0xff]
    %v107 = vld [vmem:[#allocation7 + $0x48] sm:$0xff]
    %v108 = vld [vmem:[#allocation7 + $0x50] sm:$0xff]
    %v109 = vld [vmem:[#allocation7 + $0x58] sm:$0xff]
    %v110 = vld [vmem:[#allocation7 + $0x60] sm:$0xff]
    %v111 = vld [vmem:[#allocation7 + $0x68] sm:$0xff]
    %v112 = vld [vmem:[#allocation7 + $0x70] sm:$0xff]
    %v113 = vld [vmem:[#allocation7 + $0x78] sm:$0xff]
    %v114 = vld [vmem:[#allocation7 + $0x80] sm:$0xff]
    %v115 = vld [vmem:[#allocation7 + $0x88] sm:$0xff]
    %v116 = vld [vmem:[#allocation7 + $0x90] sm:$0xff]
    %v117 = vld [vmem:[#allocation7 + $0x98] sm:$0xff]
    %v118 = vld [vmem:[#allocation7 + $0xa0] sm:$0xff]
    %v119 = vld [vmem:[#allocation7 + $0xa8] sm:$0xff]
    %v120 = vld [vmem:[#allocation7 + $0xb0] sm:$0xff]
    %v121 = vld [vmem:[#allocation7 + $0xb8] sm:$0xff]
    %v122 = vld [vmem:[#allocation7 + $0xc0] sm:$0xff]
    %v123 = vld [vmem:[#allocation7 + $0xc8] sm:$0xff]
    %v124 = vld [vmem:[#allocation7 + $0xd0] sm:$0xff]
    %v125 = vld [vmem:[#allocation7 + $0xd8] sm:$0xff]
    %v126 = vld [vmem:[#allocation7 + $0xe0] sm:$0xff]
    %v127 = vld [vmem:[#allocation7 + $0xe8] sm:$0xff]
    %v128 = vld [vmem:[#allocation7 + $0xf0] sm:$0xff]
    %v129 = vld [vmem:[#allocation7 + $0xf8] sm:$0xff]
    %v130 = vld [vmem:[#allocation8] sm:$0xff]
    %v131 = vld [vmem:[#allocation8 + $0x8] sm:$0xff]
    %v132 = vld [vmem:[#allocation8 + $0x10] sm:$0xff]
    %v133 = vld [vmem:[#allocation8 + $0x18] sm:$0xff]
    %v134 = vld [vmem:[#allocation8 + $0x20] sm:$0xff]
    %v135 = vld [vmem:[#allocation8 + $0x28] sm:$0xff]
    %v136 = vld [vmem:[#allocation8 + $0x30] sm:$0xff]
    %v137 = vld [vmem:[#allocation8 + $0x38] sm:$0xff]
    %v138 = vld [vmem:[#allocation10] sm:$0xff]
    %v139 = vld [vmem:[#allocation10 + $0x8] sm:$0xff]
    %v140 = vld [vmem:[#allocation10 + $0x10] sm:$0xff]
    %v141 = vld [vmem:[#allocation10 + $0x18] sm:$0xff]
    %v142 = vld [vmem:[#allocation10 + $0x20] sm:$0xff]
    %v143 = vld [vmem:[#allocation10 + $0x28] sm:$0xff]
    %v144 = vld [vmem:[#allocation10 + $0x30] sm:$0xff]
    %v145 = vld [vmem:[#allocation10 + $0x38] sm:$0xff]
    %v146 = vld [vmem:[#allocation10 + $0x40] sm:$0xff]
    %v147 = vld [vmem:[#allocation10 + $0x48] sm:$0xff]
    %v148 = vld [vmem:[#allocation10 + $0x50] sm:$0xff]
    %v149 = vld [vmem:[#allocation10 + $0x58] sm:$0xff]
    %v150 = vld [vmem:[#allocation10 + $0x60] sm:$0xff]
    %v151 = vld [vmem:[#allocation10 + $0x68] sm:$0xff]
    %v152 = vld [vmem:[#allocation10 + $0x70] sm:$0xff]
    %v153 = vld [vmem:[#allocation10 + $0x78] sm:$0xff]
    %v154 = vld [vmem:[#allocation10 + $0x80] sm:$0xff]
    %v155 = vld [vmem:[#allocation10 + $0x88] sm:$0xff]
    %v156 = vld [vmem:[#allocation10 + $0x90] sm:$0xff]
    %v157 = vld [vmem:[#allocation10 + $0x98] sm:$0xff]
    %v158 = vld [vmem:[#allocation10 + $0xa0] sm:$0xff]
    %v159 = vld [vmem:[#allocation10 + $0xa8] sm:$0xff]
    %v160 = vld [vmem:[#allocation10 + $0xb0] sm:$0xff]
    %v161 = vld [vmem:[#allocation10 + $0xb8] sm:$0xff]
    %v162 = vld [vmem:[#allocation10 + $0xc0] sm:$0xff]
    %v163 = vld [vmem:[#allocation10 + $0xc8] sm:$0xff]
    %v164 = vld [vmem:[#allocation10 + $0xd0] sm:$0xff]
    %v165 = vld [vmem:[#allocation10 + $0xd8] sm:$0xff]
    %v166 = vld [vmem:[#allocation10 + $0xe0] sm:$0xff]
    %v167 = vld [vmem:[#allocation10 + $0xe8] sm:$0xff]
    %v168 = vld [vmem:[#allocation10 + $0xf0] sm:$0xff]
    %v169 = vld [vmem:[#allocation10 + $0xf8] sm:$0xff]
    %v170 = vld [vmem:[#allocation10 + $0x100] sm:$0xff]
    %v171 = vld [vmem:[#allocation10 + $0x108] sm:$0xff]
    %v172 = vld [vmem:[#allocation10 + $0x110] sm:$0xff]
    %v173 = vld [vmem:[#allocation10 + $0x118] sm:$0xff]
    %v174 = vld [vmem:[#allocation10 + $0x120] sm:$0xff]
    %v175 = vld [vmem:[#allocation10 + $0x128] sm:$0xff]
    %v176 = vld [vmem:[#allocation10 + $0x130] sm:$0xff]
    %v177 = vld [vmem:[#allocation10 + $0x138] sm:$0xff]
    %v178 = vld [vmem:[#allocation10 + $0x140] sm:$0xff]
    %v179 = vld [vmem:[#allocation10 + $0x148] sm:$0xff]
    %v180 = vld [vmem:[#allocation10 + $0x150] sm:$0xff]
    %v181 = vld [vmem:[#allocation10 + $0x158] sm:$0xff]
    %v182 = vld [vmem:[#allocation10 + $0x160] sm:$0xff]
    %v183 = vld [vmem:[#allocation10 + $0x168] sm:$0xff]
    %v184 = vld [vmem:[#allocation10 + $0x170] sm:$0xff]
    %v185 = vld [vmem:[#allocation10 + $0x178] sm:$0xff]
    %v186 = vld [vmem:[#allocation10 + $0x180] sm:$0xff]
    %v187 = vld [vmem:[#allocation10 + $0x188] sm:$0xff]
    %v188 = vld [vmem:[#allocation10 + $0x190] sm:$0xff]
    %v189 = vld [vmem:[#allocation10 + $0x198] sm:$0xff]
    %v190 = vld [vmem:[#allocation10 + $0x1a0] sm:$0xff]
    %v191 = vld [vmem:[#allocation10 + $0x1a8] sm:$0xff]
    %v192 = vld [vmem:[#allocation10 + $0x1b0] sm:$0xff]
    %v193 = vld [vmem:[#allocation10 + $0x1b8] sm:$0xff]
    %v194 = vld [vmem:[#allocation10 + $0x1c0] sm:$0xff]
    %v195 = vld [vmem:[#allocation10 + $0x1c8] sm:$0xff]
    %v196 = vld [vmem:[#allocation10 + $0x1d0] sm:$0xff]
    %v197 = vld [vmem:[#allocation10 + $0x1d8] sm:$0xff]
    %v198 = vld [vmem:[#allocation10 + $0x1e0] sm:$0xff]
    %v199 = vld [vmem:[#allocation10 + $0x1e8] sm:$0xff]
    %v200 = vld [vmem:[#allocation10 + $0x1f0] sm:$0xff]
    %v201 = vld [vmem:[#allocation10 + $0x1f8] sm:$0xff]
    %vm202 = vcmp.gt.f32.partialorder %v130, 0.5
    %vm203 = vcmp.gt.f32.partialorder %v131, 0.5
    %vm204 = vcmp.gt.f32.partialorder %v132, 0.5
    %vm205 = vcmp.gt.f32.partialorder %v133, 0.5
    %vm206 = vcmp.gt.f32.partialorder %v134, 0.5
    %vm207 = vcmp.gt.f32.partialorder %v135, 0.5
    %vm208 = vcmp.gt.f32.partialorder %v136, 0.5
    %vm209 = vcmp.gt.f32.partialorder %v137, 0.5
    %214 = vrot.lane.b32.xlu0 %v92, 112
    %v215 = vpop.permute.xlu0 %214
    %216 = vrot.lane.b32.xlu0 %v93, 112
    %v217 = vpop.permute.xlu0 %216
    %218 = vrot.lane.b32.xlu0 %v94, 112
    %v219 = vpop.permute.xlu0 %218
    %220 = vrot.lane.b32.xlu0 %v95, 112
    %v221 = vpop.permute.xlu0 %220
    %v226 = vadd.f32 %v92, %v215
    %v227 = vadd.f32 %v93, %v217
    %v228 = vadd.f32 %v94, %v219
    %v229 = vadd.f32 %v95, %v221
    %vm230 = vcmask 130048
    %v232 = vsel %vm230, %v226, 0
    %v235 = vsel %vm230, %v227, 0
    %v238 = vsel %vm230, %v228, 0
    %v241 = vsel %vm230, %v229, 0
    %243 = vmatprep.subr.mxu0 0.0
    %244 = vmatpush1.msra.mxu0 %v96
    %245 = vmatprep.subr.mxu0 0.0
    %246 = vmatpush1.msra.mxu0 %v97
    %247 = vmatprep.subr.mxu0 0.0
    %248 = vmatpush1.msra.mxu0 0.0
    %249 = vmatprep.subr.mxu0 0.0
    %250 = vmatpush1.msra.mxu0 0.0
    %251 = vmatprep.subr.mxu0 0.0
    %252 = vmatpush1.msra.mxu0 0.0
    %253 = vmatprep.subr.mxu0 0.0
    %254 = vmatpush1.msra.mxu0 0.0
    %255 = vmatprep.subr.mxu0 0.0
    %256 = vmatpush1.msra.mxu0 0.0
    %257 = vmatprep.subr.mxu0 0.0
    %258 = vmatpush1.msra.mxu0 0.0
    %259 = vmatprep.subr.mxu0 0.0
    %260 = vmatpush1.msra.mxu0 0.0
    %261 = vmatprep.subr.mxu0 0.0
    %262 = vmatpush1.msra.mxu0 0.0
    %263 = vmatprep.subr.mxu0 0.0
    %264 = vmatpush1.msra.mxu0 0.0
    %265 = vmatprep.subr.mxu0 0.0
    %266 = vmatpush1.msra.mxu0 0.0
    %267 = vmatprep.subr.mxu0 0.0
    %268 = vmatpush1.msra.mxu0 0.0
    %269 = vmatprep.subr.mxu0 0.0
    %270 = vmatpush1.msra.mxu0 0.0
    %271 = vmatprep.subr.mxu0 0.0
    %272 = vmatpush1.msra.mxu0 0.0
    %273 = vmatprep.subr.mxu0 0.0
    %274 = vmatpush1.msra.mxu0 0.0
    %275 = vmatprep.subr.mxu0 0.0
    %276 = vmatpush1.msra.mxu0 0.0
    %277 = vmatprep.subr.mxu0 0.0
    %278 = vmatpush1.msra.mxu0 0.0
    %279 = vmatprep.subr.mxu0 0.0
    %280 = vmatpush1.msra.mxu0 0.0
    %281 = vmatprep.subr.mxu0 0.0
    %282 = vmatpush1.msra.mxu0 0.0
    %283 = vmatprep.subr.mxu0 0.0
    %284 = vmatpush1.msra.mxu0 0.0
    %285 = vmatprep.subr.mxu0 0.0
    %286 = vmatpush1.msra.mxu0 0.0
    %287 = vmatprep.subr.mxu0 0.0
    %288 = vmatpush1.msra.mxu0 0.0
    %289 = vmatprep.subr.mxu0 0.0
    %290 = vmatpush1.msra.mxu0 0.0
    %291 = vmatprep.subr.mxu0 0.0
    %292 = vmatpush1.msra.mxu0 0.0
    %293 = vmatprep.subr.mxu0 0.0
    %294 = vmatpush1.msra.mxu0 0.0
    %295 = vmatprep.subr.mxu0 0.0
    %296 = vmatpush1.msra.mxu0 0.0
    %297 = vmatprep.subr.mxu0 0.0
    %298 = vmatpush1.msra.mxu0 0.0
    %299 = vmatprep.subr.mxu0 0.0
    %300 = vmatpush1.msra.mxu0 0.0
    %301 = vmatprep.subr.mxu0 0.0
    %302 = vmatpush1.msra.mxu0 0.0
    %303 = vmatprep.subr.mxu0 0.0
    %304 = vmatpush1.msra.mxu0 0.0
    %305 = vmatprep.subr.mxu0 0.0
    %306 = vmatpush1.msra.mxu0 0.0
    %307 = vmatprep.mubr.f32.mxu0 0.0
    %308 = vmatmul.mubr.f32.gmra.mrb[0].mxu0 %v232
    %v309 = vpop.f32.mrb[0].mxu0
    %v310 = vadd.f32 0.0, %v309
    %v311 = vpop.f32.mrb[0].mxu0
    %312 = vmatprep.mubr.f32.mxu0 0.0
    %313 = vmatmul.mubr.f32.gmra.mrb[0].mxu0 %v235
    %v314 = vpop.f32.mrb[0].mxu0
    %v315 = vadd.f32 0.0, %v314
    %v316 = vpop.f32.mrb[0].mxu0
    %317 = vmatprep.mubr.f32.mxu0 0.0
    %318 = vmatmul.mubr.f32.gmra.mrb[0].mxu0 %v238
    %v319 = vpop.f32.mrb[0].mxu0
    %v320 = vadd.f32 0.0, %v319
    %v321 = vpop.f32.mrb[0].mxu0
    %322 = vmatprep.mubr.f32.mxu0 0.0
    %323 = vmatmul.mubr.f32.gmra.mrb[0].mxu0 %v241
    %v324 = vpop.f32.mrb[0].mxu0
    %v325 = vadd.f32 0.0, %v324
    %v326 = vpop.f32.mrb[0].mxu0
    %327 = vdwg.mxu0
    %328 = vmatprep.subr.mxu0 %v99
    %329 = vmatpush1.msra.mxu0 %v98
    %330 = vmatprep.subr.mxu0 %v101
    %331 = vmatpush1.msra.mxu0 %v100
    %332 = vmatprep.subr.mxu0 %v103
    %333 = vmatpush1.msra.mxu0 %v102
    %334 = vmatprep.subr.mxu0 %v105
    %335 = vmatpush1.msra.mxu0 %v104
    %336 = vmatprep.subr.mxu0 %v107
    %337 = vmatpush1.msra.mxu0 %v106
    %338 = vmatprep.subr.mxu0 %v109
    %339 = vmatpush1.msra.mxu0 %v108
    %340 = vmatprep.subr.mxu0 %v111
    %341 = vmatpush1.msra.mxu0 %v110
    %342 = vmatprep.subr.mxu0 %v113
    %343 = vmatpush1.msra.mxu0 %v112
    %344 = vmatprep.subr.mxu0 %v115
    %345 = vmatpush1.msra.mxu0 %v114
    %346 = vmatprep.subr.mxu0 %v117
    %347 = vmatpush1.msra.mxu0 %v116
    %348 = vmatprep.subr.mxu0 %v119
    %349 = vmatpush1.msra.mxu0 %v118
    %350 = vmatprep.subr.mxu0 %v121
    %351 = vmatpush1.msra.mxu0 %v120
    %352 = vmatprep.subr.mxu0 %v123
    %353 = vmatpush1.msra.mxu0 %v122
    %354 = vmatprep.subr.mxu0 %v125
    %355 = vmatpush1.msra.mxu0 %v124
    %356 = vmatprep.subr.mxu0 %v127
    %357 = vmatpush1.msra.mxu0 %v126
    %358 = vmatprep.subr.mxu0 %v129
    %359 = vmatpush1.msra.mxu0 %v128
    %360 = vmatprep.subr.mxu0 0.0
    %361 = vmatpush1.msra.mxu0 0.0
    %362 = vmatprep.subr.mxu0 0.0
    %363 = vmatpush1.msra.mxu0 0.0
    %364 = vmatprep.subr.mxu0 0.0
    %365 = vmatpush1.msra.mxu0 0.0
    %366 = vmatprep.subr.mxu0 0.0
    %367 = vmatpush1.msra.mxu0 0.0
    %368 = vmatprep.subr.mxu0 0.0
    %369 = vmatpush1.msra.mxu0 0.0
    %370 = vmatprep.subr.mxu0 0.0
    %371 = vmatpush1.msra.mxu0 0.0
    %372 = vmatprep.subr.mxu0 0.0
    %373 = vmatpush1.msra.mxu0 0.0
    %374 = vmatprep.subr.mxu0 0.0
    %375 = vmatpush1.msra.mxu0 0.0
    %376 = vmatprep.subr.mxu0 0.0
    %377 = vmatpush1.msra.mxu0 0.0
    %378 = vmatprep.subr.mxu0 0.0
    %379 = vmatpush1.msra.mxu0 0.0
    %380 = vmatprep.subr.mxu0 0.0
    %381 = vmatpush1.msra.mxu0 0.0
    %382 = vmatprep.subr.mxu0 0.0
    %383 = vmatpush1.msra.mxu0 0.0
    %384 = vmatprep.subr.mxu0 0.0
    %385 = vmatpush1.msra.mxu0 0.0
    %386 = vmatprep.subr.mxu0 0.0
    %387 = vmatpush1.msra.mxu0 0.0
    %388 = vmatprep.subr.mxu0 0.0
    %389 = vmatpush1.msra.mxu0 0.0
    %390 = vmatprep.subr.mxu0 0.0
    %391 = vmatpush1.msra.mxu0 0.0
    %392 = vmatprep.mubr.f32.mxu0 0.0
    %393 = vmatmul.mubr.f32.gmra.mrb[0].mxu0 %v310
    %v394 = vpop.f32.mrb[0].mxu0
    %v395 = vadd.f32 0.0, %v394
    %v396 = vpop.f32.mrb[0].mxu0
    %v397 = vadd.f32 0.0, %v396
    %398 = vmatprep.mubr.f32.mxu0 0.0
    %399 = vmatmul.mubr.f32.gmra.mrb[0].mxu0 %v315
    %v400 = vpop.f32.mrb[0].mxu0
    %v401 = vadd.f32 0.0, %v400
    %v402 = vpop.f32.mrb[0].mxu0
    %v403 = vadd.f32 0.0, %v402
    %404 = vmatprep.mubr.f32.mxu0 0.0
    %405 = vmatmul.mubr.f32.gmra.mrb[0].mxu0 %v320
    %v406 = vpop.f32.mrb[0].mxu0
    %v407 = vadd.f32 0.0, %v406
    %v408 = vpop.f32.mrb[0].mxu0
    %v409 = vadd.f32 0.0, %v408
    %410 = vmatprep.mubr.f32.mxu0 0.0
    %411 = vmatmul.mubr.f32.gmra.mrb[0].mxu0 %v325
    %v412 = vpop.f32.mrb[0].mxu0
    %v413 = vadd.f32 0.0, %v412
    %v414 = vpop.f32.mrb[0].mxu0
    %v415 = vadd.f32 0.0, %v414
    %416 = vdwg.mxu0
    %v417 = vand.u32 2147483647, %v395
    %v418 = vand.u32 2147483647, %v397
    %v419 = vand.u32 2147483647, %v401
    %v420 = vand.u32 2147483647, %v403
    %v421 = vand.u32 2147483647, %v407
    %v422 = vand.u32 2147483647, %v409
    %v423 = vand.u32 2147483647, %v413
    %v424 = vand.u32 2147483647, %v415
    %v425 = vsel %vm202, 1.0, %v417
    %v426 = vsel %vm203, 1.0, %v418
    %v427 = vsel %vm204, 1.0, %v419
    %v428 = vsel %vm205, 1.0, %v420
    %v429 = vsel %vm206, 1.0, %v421
    %v430 = vsel %vm207, 1.0, %v422
    %v431 = vsel %vm208, 1.0, %v423
    %v432 = vsel %vm209, 1.0, %v424
    %433 = vmatprep.subr.mxu0 %v139
    %434 = vmatpush1.msra.mxu0 %v138
    %435 = vmatprep.subr.mxu0 %v141
    %436 = vmatpush1.msra.mxu0 %v140
    %437 = vmatprep.subr.mxu0 %v143
    %438 = vmatpush1.msra.mxu0 %v142
    %439 = vmatprep.subr.mxu0 %v145
    %440 = vmatpush1.msra.mxu0 %v144
    %441 = vmatprep.subr.mxu0 %v147
    %442 = vmatpush1.msra.mxu0 %v146
    %443 = vmatprep.subr.mxu0 %v149
    %444 = vmatpush1.msra.mxu0 %v148
    %445 = vmatprep.subr.mxu0 %v151
    %446 = vmatpush1.msra.mxu0 %v150
    %447 = vmatprep.subr.mxu0 %v153
    %448 = vmatpush1.msra.mxu0 %v152
    %449 = vmatprep.subr.mxu0 %v155
    %450 = vmatpush1.msra.mxu0 %v154
    %451 = vmatprep.subr.mxu0 %v157
    %452 = vmatpush1.msra.mxu0 %v156
    %453 = vmatprep.subr.mxu0 %v159
    %454 = vmatpush1.msra.mxu0 %v158
    %455 = vmatprep.subr.mxu0 %v161
    %456 = vmatpush1.msra.mxu0 %v160
    %457 = vmatprep.subr.mxu0 %v163
    %458 = vmatpush1.msra.mxu0 %v162
    %459 = vmatprep.subr.mxu0 %v165
    %460 = vmatpush1.msra.mxu0 %v164
    %461 = vmatprep.subr.mxu0 %v167
    %462 = vmatpush1.msra.mxu0 %v166
    %463 = vmatprep.subr.mxu0 %v169
    %464 = vmatpush1.msra.mxu0 %v168
    %465 = vmatprep.subr.mxu0 %v171
    %466 = vmatpush1.msra.mxu0 %v170
    %467 = vmatprep.subr.mxu0 %v173
    %468 = vmatpush1.msra.mxu0 %v172
    %469 = vmatprep.subr.mxu0 %v175
    %470 = vmatpush1.msra.mxu0 %v174
    %471 = vmatprep.subr.mxu0 %v177
    %472 = vmatpush1.msra.mxu0 %v176
    %473 = vmatprep.subr.mxu0 %v179
    %474 = vmatpush1.msra.mxu0 %v178
    %475 = vmatprep.subr.mxu0 %v181
    %476 = vmatpush1.msra.mxu0 %v180
    %477 = vmatprep.subr.mxu0 %v183
    %478 = vmatpush1.msra.mxu0 %v182
    %479 = vmatprep.subr.mxu0 %v185
    %480 = vmatpush1.msra.mxu0 %v184
    %481 = vmatprep.subr.mxu0 %v187
    %482 = vmatpush1.msra.mxu0 %v186
    %483 = vmatprep.subr.mxu0 %v189
    %484 = vmatpush1.msra.mxu0 %v188
    %485 = vmatprep.subr.mxu0 %v191
    %486 = vmatpush1.msra.mxu0 %v190
    %487 = vmatprep.subr.mxu0 %v193
    %488 = vmatpush1.msra.mxu0 %v192
    %489 = vmatprep.subr.mxu0 %v195
    %490 = vmatpush1.msra.mxu0 %v194
    %491 = vmatprep.subr.mxu0 %v197
    %492 = vmatpush1.msra.mxu0 %v196
    %493 = vmatprep.subr.mxu0 %v199
    %494 = vmatpush1.msra.mxu0 %v198
    %495 = vmatprep.subr.mxu0 %v201
    %496 = vmatpush1.msra.mxu0 %v200
    %497 = vmatprep.mubr.f32.mxu0 %v426
    %498 = vmatmul.mubr.f32.gmra.mrb[0].mxu0 %v425
    %v499 = vpop.f32.mrb[0].mxu0
    %v500 = vadd.f32 0.0, %v499
    %v501 = vpop.f32.mrb[0].mxu0
    %v502 = vadd.f32 0.0, %v501
    %503 = vmatprep.mubr.f32.mxu0 %v428
    %504 = vmatmul.mubr.f32.gmra.mrb[0].mxu0 %v427
    %v505 = vpop.f32.mrb[0].mxu0
    %v506 = vadd.f32 0.0, %v505
    %v507 = vpop.f32.mrb[0].mxu0
    %v508 = vadd.f32 0.0, %v507
    %509 = vmatprep.mubr.f32.mxu0 %v430
    %510 = vmatmul.mubr.f32.gmra.mrb[0].mxu0 %v429
    %v511 = vpop.f32.mrb[0].mxu0
    %v512 = vadd.f32 0.0, %v511
    %v513 = vpop.f32.mrb[0].mxu0
    %v514 = vadd.f32 0.0, %v513
    %515 = vmatprep.mubr.f32.mxu0 %v432
    %516 = vmatmul.mubr.f32.gmra.mrb[0].mxu0 %v431
    %v517 = vpop.f32.mrb[0].mxu0
    %v518 = vadd.f32 0.0, %v517
    %v519 = vpop.f32.mrb[0].mxu0
    %v520 = vadd.f32 0.0, %v519
    %521 = vdwg.mxu0
    %v522 = vrsqrt.pop %v500
    %v523 = vrsqrt.pop %v502
    %v524 = vrsqrt.pop %v506
    %v525 = vrsqrt.pop %v508
    %v526 = vrsqrt.pop %v512
    %v527 = vrsqrt.pop %v514
    %v528 = vrsqrt.pop %v518
    %v529 = vrsqrt.pop %v520
    %v530 = vmul.f32 %v522, %v130
    %v531 = vmul.f32 %v523, %v131
    %v532 = vmul.f32 %v524, %v132
    %v533 = vmul.f32 %v525, %v133
    %v534 = vmul.f32 %v526, %v134
    %v535 = vmul.f32 %v527, %v135
    %v536 = vmul.f32 %v528, %v136
    %v537 = vmul.f32 %v529, %v137
    %v538 = vadd.f32 %v530, %v532
    %v539 = vadd.f32 %v538, %v534
    %v540 = vadd.f32 %v539, %v536
    %v541 = vrot.slane %v540, 4
    %v542 = vadd.f32 %v540, %v541
    %v543 = vrot.slane %v542, 2
    %v544 = vadd.f32 %v542, %v543
    %v545 = vrot.slane %v544, 1
    %v546 = vadd.f32 %v544, %v545
    %v547 = vadd.f32 %v531, %v533
    %v548 = vadd.f32 %v547, %v535
    %v549 = vadd.f32 %v548, %v537
    %v550 = vrot.slane %v549, 4
    %v551 = vadd.f32 %v549, %v550
    %v552 = vrot.slane %v551, 2
    %v553 = vadd.f32 %v551, %v552
    %v554 = vrot.slane %v553, 1
    %v555 = vadd.f32 %v553, %v554
    %v556 = vmul.f32 %v425, %v522
    %v557 = vmul.f32 %v426, %v523
    %v558 = vmul.f32 %v427, %v524
    %v559 = vmul.f32 %v428, %v525
    %v560 = vmul.f32 %v429, %v526
    %v561 = vmul.f32 %v430, %v527
    %v562 = vmul.f32 %v431, %v528
    %v563 = vmul.f32 %v432, %v529
    %v564 = vmul.f32 %v556, %v546
    %v565 = vmul.f32 %v557, %v555
    %v566 = vmul.f32 %v558, %v546
    %v567 = vmul.f32 %v559, %v555
    %v568 = vmul.f32 %v560, %v546
    %v569 = vmul.f32 %v561, %v555
    %v570 = vmul.f32 %v562, %v546
    %v571 = vmul.f32 %v563, %v555
    %v572 = vmul.f32 %v564, %v138
    %v573 = vmul.f32 %v565, %v139
    %v574 = vmul.f32 %v566, %v140
    %v575 = vmul.f32 %v567, %v141
    %v576 = vmul.f32 %v568, %v142
    %v577 = vmul.f32 %v569, %v143
    %v578 = vmul.f32 %v570, %v144
    %v579 = vmul.f32 %v571, %v145
    %v580 = vmul.f32 %v564, %v146
    %v581 = vmul.f32 %v565, %v147
    %v582 = vmul.f32 %v566, %v148
    %v583 = vmul.f32 %v567, %v149
    %v584 = vmul.f32 %v568, %v150
    %v585 = vmul.f32 %v569, %v151
    %v586 = vmul.f32 %v570, %v152
    %v587 = vmul.f32 %v571, %v153
    %v588 = vmul.f32 %v564, %v154
    %v589 = vmul.f32 %v565, %v155
    %v590 = vmul.f32 %v566, %v156
    %v591 = vmul.f32 %v567, %v157
    %v592 = vmul.f32 %v568, %v158
    %v593 = vmul.f32 %v569, %v159
    %v594 = vmul.f32 %v570, %v160
    %v595 = vmul.f32 %v571, %v161
    %v596 = vmul.f32 %v564, %v162
    %v597 = vmul.f32 %v565, %v163
    %v598 = vmul.f32 %v566, %v164
    %v599 = vmul.f32 %v567, %v165
    %v600 = vmul.f32 %v568, %v166
    %v601 = vmul.f32 %v569, %v167
    %v602 = vmul.f32 %v570, %v168
    %v603 = vmul.f32 %v571, %v169
    %v604 = vmul.f32 %v564, %v170
    %v605 = vmul.f32 %v565, %v171
    %v606 = vmul.f32 %v566, %v172
    %v607 = vmul.f32 %v567, %v173
    %v608 = vmul.f32 %v568, %v174
    %v609 = vmul.f32 %v569, %v175
    %v610 = vmul.f32 %v570, %v176
    %v611 = vmul.f32 %v571, %v177
    %v612 = vmul.f32 %v564, %v178
    %v613 = vmul.f32 %v565, %v179
    %v614 = vmul.f32 %v566, %v180
    %v615 = vmul.f32 %v567, %v181
    %v616 = vmul.f32 %v568, %v182
    %v617 = vmul.f32 %v569, %v183
    %v618 = vmul.f32 %v570, %v184
    %v619 = vmul.f32 %v571, %v185
    %v620 = vmul.f32 %v564, %v186
    %v621 = vmul.f32 %v565, %v187
    %v622 = vmul.f32 %v566, %v188
    %v623 = vmul.f32 %v567, %v189
    %v624 = vmul.f32 %v568, %v190
    %v625 = vmul.f32 %v569, %v191
    %v626 = vmul.f32 %v570, %v192
    %v627 = vmul.f32 %v571, %v193
    %v628 = vmul.f32 %v564, %v194
    %v629 = vmul.f32 %v565, %v195
    %v630 = vmul.f32 %v566, %v196
    %v631 = vmul.f32 %v567, %v197
    %v632 = vmul.f32 %v568, %v198
    %v633 = vmul.f32 %v569, %v199
    %v634 = vmul.f32 %v570, %v200
    %v635 = vmul.f32 %v571, %v201
    %636 = vmatprep.subr.mxu0 %v573
    %637 = vmatpush1.xpose.msra.mxu0 %v572
    %638 = vmatprep.subr.mxu0 %v575
    %639 = vmatpush1.xpose.msra.mxu0 %v574
    %640 = vmatprep.subr.mxu0 %v577
    %641 = vmatpush1.xpose.msra.mxu0 %v576
    %642 = vmatprep.subr.mxu0 %v579
    %643 = vmatpush1.xpose.msra.mxu0 %v578
    %644 = vmatprep.subr.mxu0 %v581
    %645 = vmatpush1.xpose.msra.mxu0 %v580
    %646 = vmatprep.subr.mxu0 %v583
    %647 = vmatpush1.xpose.msra.mxu0 %v582
    %648 = vmatprep.subr.mxu0 %v585
    %649 = vmatpush1.xpose.msra.mxu0 %v584
    %650 = vmatprep.subr.mxu0 %v587
    %651 = vmatpush1.xpose.msra.mxu0 %v586
    %652 = vmatprep.subr.mxu0 %v589
    %653 = vmatpush1.xpose.msra.mxu0 %v588
    %654 = vmatprep.subr.mxu0 %v591
    %655 = vmatpush1.xpose.msra.mxu0 %v590
    %656 = vmatprep.subr.mxu0 %v593
    %657 = vmatpush1.xpose.msra.mxu0 %v592
    %658 = vmatprep.subr.mxu0 %v595
    %659 = vmatpush1.xpose.msra.mxu0 %v594
    %660 = vmatprep.subr.mxu0 %v597
    %661 = vmatpush1.xpose.msra.mxu0 %v596
    %662 = vmatprep.subr.mxu0 %v599
    %663 = vmatpush1.xpose.msra.mxu0 %v598
    %664 = vmatprep.subr.mxu0 %v601
    %665 = vmatpush1.xpose.msra.mxu0 %v600
    %666 = vmatprep.subr.mxu0 %v603
    %667 = vmatpush1.xpose.msra.mxu0 %v602
    %668 = vmatprep.subr.mxu0 %v605
    %669 = vmatpush1.xpose.msra.mxu0 %v604
    %670 = vmatprep.subr.mxu0 %v607
    %671 = vmatpush1.xpose.msra.mxu0 %v606
    %672 = vmatprep.subr.mxu0 %v609
    %673 = vmatpush1.xpose.msra.mxu0 %v608
    %674 = vmatprep.subr.mxu0 %v611
    %675 = vmatpush1.xpose.msra.mxu0 %v610
    %676 = vmatprep.subr.mxu0 %v613
    %677 = vmatpush1.xpose.msra.mxu0 %v612
    %678 = vmatprep.subr.mxu0 %v615
    %679 = vmatpush1.xpose.msra.mxu0 %v614
    %680 = vmatprep.subr.mxu0 %v617
    %681 = vmatpush1.xpose.msra.mxu0 %v616
    %682 = vmatprep.subr.mxu0 %v619
    %683 = vmatpush1.xpose.msra.mxu0 %v618
    %684 = vmatprep.subr.mxu0 %v621
    %685 = vmatpush1.xpose.msra.mxu0 %v620
    %686 = vmatprep.subr.mxu0 %v623
    %687 = vmatpush1.xpose.msra.mxu0 %v622
    %688 = vmatprep.subr.mxu0 %v625
    %689 = vmatpush1.xpose.msra.mxu0 %v624
    %690 = vmatprep.subr.mxu0 %v627
    %691 = vmatpush1.xpose.msra.mxu0 %v626
    %692 = vmatprep.subr.mxu0 %v629
    %693 = vmatpush1.xpose.msra.mxu0 %v628
    %694 = vmatprep.subr.mxu0 %v631
    %695 = vmatpush1.xpose.msra.mxu0 %v630
    %696 = vmatprep.subr.mxu0 %v633
    %697 = vmatpush1.xpose.msra.mxu0 %v632
    %698 = vmatprep.subr.mxu0 %v635
    %699 = vmatpush1.xpose.msra.mxu0 %v634
    %700 = vmatprep.mubr.f32.mxu0 %v131
    %701 = vmatmul.mubr.f32.gmra.mrb[0].mxu0 %v130
    %v702 = vpop.f32.mrb[0].mxu0
    %v703 = vadd.f32 0.0, %v702
    %v704 = vpop.f32.mrb[0].mxu0
    %v705 = vadd.f32 0.0, %v704
    %706 = vmatprep.mubr.f32.mxu0 %v133
    %707 = vmatmul.mubr.f32.gmra.mrb[0].mxu0 %v132
    %v708 = vpop.f32.mrb[0].mxu0
    %v709 = vadd.f32 0.0, %v708
    %v710 = vpop.f32.mrb[0].mxu0
    %v711 = vadd.f32 0.0, %v710
    %712 = vmatprep.mubr.f32.mxu0 %v135
    %713 = vmatmul.mubr.f32.gmra.mrb[0].mxu0 %v134
    %v714 = vpop.f32.mrb[0].mxu0
    %v715 = vadd.f32 0.0, %v714
    %v716 = vpop.f32.mrb[0].mxu0
    %v717 = vadd.f32 0.0, %v716
    %718 = vmatprep.mubr.f32.mxu0 %v137
    %719 = vmatmul.mubr.f32.gmra.mrb[0].mxu0 %v136
    %v720 = vpop.f32.mrb[0].mxu0
    %v721 = vadd.f32 0.0, %v720
    %v722 = vpop.f32.mrb[0].mxu0
    %v723 = vadd.f32 0.0, %v722
    %724 = vdwg.mxu0
    %725 = vst [vmem:[#allocation11] sm:$0xff] %v703
    %726 = vst [vmem:[#allocation11 + $0x8] sm:$0xff] %v705
    %727 = vst [vmem:[#allocation11 + $0x10] sm:$0xff] %v709
    %728 = vst [vmem:[#allocation11 + $0x18] sm:$0xff] %v711
    %729 = vst [vmem:[#allocation11 + $0x20] sm:$0xff] %v715
    %730 = vst [vmem:[#allocation11 + $0x28] sm:$0xff] %v717
    %731 = vst [vmem:[#allocation11 + $0x30] sm:$0xff] %v721
    %732 = vst [vmem:[#allocation11 + $0x38] sm:$0xff] %v723
    %733 = vmatprep.subr.mxu0 %v573
    %734 = vmatpush1.msra.mxu0 %v572
    %735 = vmatprep.subr.mxu0 %v575
    %736 = vmatpush1.msra.mxu0 %v574
    %737 = vmatprep.subr.mxu0 %v577
    %738 = vmatpush1.msra.mxu0 %v576
    %739 = vmatprep.subr.mxu0 %v579
    %740 = vmatpush1.msra.mxu0 %v578
    %741 = vmatprep.subr.mxu0 %v581
    %742 = vmatpush1.msra.mxu0 %v580
    %743 = vmatprep.subr.mxu0 %v583
    %744 = vmatpush1.msra.mxu0 %v582
    %745 = vmatprep.subr.mxu0 %v585
    %746 = vmatpush1.msra.mxu0 %v584
    %747 = vmatprep.subr.mxu0 %v587
    %748 = vmatpush1.msra.mxu0 %v586
    %749 = vmatprep.subr.mxu0 %v589
    %750 = vmatpush1.msra.mxu0 %v588
    %751 = vmatprep.subr.mxu0 %v591
    %752 = vmatpush1.msra.mxu0 %v590
    %753 = vmatprep.subr.mxu0 %v593
    %754 = vmatpush1.msra.mxu0 %v592
    %755 = vmatprep.subr.mxu0 %v595
    %756 = vmatpush1.msra.mxu0 %v594
    %757 = vmatprep.subr.mxu0 %v597
    %758 = vmatpush1.msra.mxu0 %v596
    %759 = vmatprep.subr.mxu0 %v599
    %760 = vmatpush1.msra.mxu0 %v598
    %761 = vmatprep.subr.mxu0 %v601
    %762 = vmatpush1.msra.mxu0 %v600
    %763 = vmatprep.subr.mxu0 %v603
    %764 = vmatpush1.msra.mxu0 %v602
    %765 = vmatprep.subr.mxu0 %v605
    %766 = vmatpush1.msra.mxu0 %v604
    %767 = vmatprep.subr.mxu0 %v607
    %768 = vmatpush1.msra.mxu0 %v606
    %769 = vmatprep.subr.mxu0 %v609
    %770 = vmatpush1.msra.mxu0 %v608
    %771 = vmatprep.subr.mxu0 %v611
    %772 = vmatpush1.msra.mxu0 %v610
    %773 = vmatprep.subr.mxu0 %v613
    %774 = vmatpush1.msra.mxu0 %v612
    %775 = vmatprep.subr.mxu0 %v615
    %776 = vmatpush1.msra.mxu0 %v614
    %777 = vmatprep.subr.mxu0 %v617
    %778 = vmatpush1.msra.mxu0 %v616
    %779 = vmatprep.subr.mxu0 %v619
    %780 = vmatpush1.msra.mxu0 %v618
    %781 = vmatprep.subr.mxu0 %v621
    %782 = vmatpush1.msra.mxu0 %v620
    %783 = vmatprep.subr.mxu0 %v623
    %784 = vmatpush1.msra.mxu0 %v622
    %785 = vmatprep.subr.mxu0 %v625
    %786 = vmatpush1.msra.mxu0 %v624
    %787 = vmatprep.subr.mxu0 %v627
    %788 = vmatpush1.msra.mxu0 %v626
    %789 = vmatprep.subr.mxu0 %v629
    %790 = vmatpush1.msra.mxu0 %v628
    %791 = vmatprep.subr.mxu0 %v631
    %792 = vmatpush1.msra.mxu0 %v630
    %793 = vmatprep.subr.mxu0 %v633
    %794 = vmatpush1.msra.mxu0 %v632
    %795 = vmatprep.subr.mxu0 %v635
    %796 = vmatpush1.msra.mxu0 %v634
    %797 = vmatprep.mubr.f32.mxu0 %v705
    %798 = vmatmul.mubr.f32.gmra.mrb[0].mxu0 %v703
    %v799 = vpop.f32.mrb[0].mxu0
    %v800 = vadd.f32 0.0, %v799
    %v801 = vpop.f32.mrb[0].mxu0
    %v802 = vadd.f32 0.0, %v801
    %803 = vmatprep.mubr.f32.mxu0 %v711
    %804 = vmatmul.mubr.f32.gmra.mrb[0].mxu0 %v709
    %v805 = vpop.f32.mrb[0].mxu0
    %v806 = vadd.f32 0.0, %v805
    %v807 = vpop.f32.mrb[0].mxu0
    %v808 = vadd.f32 0.0, %v807
    %809 = vmatprep.mubr.f32.mxu0 %v717
    %810 = vmatmul.mubr.f32.gmra.mrb[0].mxu0 %v715
    %v811 = vpop.f32.mrb[0].mxu0
    %v812 = vadd.f32 0.0, %v811
    %v813 = vpop.f32.mrb[0].mxu0
    %v814 = vadd.f32 0.0, %v813
    %815 = vmatprep.mubr.f32.mxu0 %v723
    %816 = vmatmul.mubr.f32.gmra.mrb[0].mxu0 %v721
    %v817 = vpop.f32.mrb[0].mxu0
    %v818 = vadd.f32 0.0, %v817
    %v819 = vpop.f32.mrb[0].mxu0
    %v820 = vadd.f32 0.0, %v819
    %821 = vdwg.mxu0
    %v822 = vsel %vm202, 1.0, %v800
    %v823 = vsel %vm203, 1.0, %v802
    %v824 = vsel %vm204, 1.0, %v806
    %v825 = vsel %vm205, 1.0, %v808
    %v826 = vsel %vm206, 1.0, %v812
    %v827 = vsel %vm207, 1.0, %v814
    %v828 = vsel %vm208, 1.0, %v818
    %v829 = vsel %vm209, 1.0, %v820
    %v830 = vand.u32 2147483647, %v822
    %v831 = vand.u32 2147483647, %v823
    %v832 = vand.u32 2147483647, %v824
    %v833 = vand.u32 2147483647, %v825
    %v834 = vand.u32 2147483647, %v826
    %v835 = vand.u32 2147483647, %v827
    %v836 = vand.u32 2147483647, %v828
    %v837 = vand.u32 2147483647, %v829
    %838 = vst [vmem:[#allocation12] sm:$0xff] %v830
    %839 = vst [vmem:[#allocation12 + $0x8] sm:$0xff] %v831
    %840 = vst [vmem:[#allocation12 + $0x10] sm:$0xff] %v832
    %841 = vst [vmem:[#allocation12 + $0x18] sm:$0xff] %v833
    %842 = vst [vmem:[#allocation12 + $0x20] sm:$0xff] %v834
    %843 = vst [vmem:[#allocation12 + $0x28] sm:$0xff] %v835
    %844 = vst [vmem:[#allocation12 + $0x30] sm:$0xff] %v836
    %845 = vst [vmem:[#allocation12 + $0x38] sm:$0xff] %v837
    // Predicated region
    $region42: #{tpu_custom_call.1} parent=1 // pred_check
      _
    $region43: #{tpu_custom_call.1} parent=1 // pred_check_branch
      %847 = sbr.rel (0) target = $region45
    $region44: #{tpu_custom_call.1} parent=1 // pred_region
      %s849 = ssub.s32 1024, 1024
      %850 = vsyncadd [#allocation4], %s849
      %s851 = sshll.u32 [#allocation11], 4
      %s852 = int_to_ptr.vmem [resolvable:$true] %s851
      %857 = dma.vmem_to_hbm [thread:$0]  %s852, 1024, %s5, [#allocation4], 256, 256, 16
    $region45: #{tpu_custom_call.1} parent=1 // pred_fallthru
      _
    // Predicated region
    $region46: #{tpu_custom_call.1} parent=1 // pred_check
      _
    $region47: #{tpu_custom_call.1} parent=1 // pred_check_branch
      %859 = sbr.rel (0) target = $region49
    $region48: #{tpu_custom_call.1} parent=1 // pred_region
      %s861 = ssub.s32 1024, 1024
      %862 = vsyncadd [#allocation13], %s861
      %s863 = sshll.u32 [#allocation12], 4
      %s864 = int_to_ptr.vmem [resolvable:$true] %s863
      %869 = dma.vmem_to_hbm [thread:$0]  %s864, 1024, %s6, [#allocation13], 256, 256, 16
    $region49: #{tpu_custom_call.1} parent=1 // pred_fallthru
      _
    // Predicated region
    $region50: #{tpu_custom_call.1} parent=1 // pred_check
      _
    $region51: #{tpu_custom_call.1} parent=1 // pred_check_branch
      %871 = sbr.rel (0) target = $region53
    $region52: #{tpu_custom_call.1} parent=1 // pred_region
      %872 = dma.done [#allocation4], 1024
    $region53: #{tpu_custom_call.1} parent=1 // pred_fallthru
      _
    // Predicated region
    $region54: #{tpu_custom_call.1} parent=1 // pred_check
      _
    $region55: #{tpu_custom_call.1} parent=1 // pred_check_branch
      %874 = sbr.rel (0) target = $region57
    $region56: #{tpu_custom_call.1} parent=1 // pred_region
      %875 = dma.done [#allocation13], 1024
    $region57: #{tpu_custom_call.1} parent=1 // pred_fallthru
      _
    %876 = vsyncpa [#allocation3], 1
    %877 = vsyncpa [#allocation6], 1
    %878 = vsyncpa [#allocation9], 1
    %879 = vsyncpa [#allocation4], 1
    %880 = vsyncpa [#allocation13], 1

</llo_original>
